<compile_context>
chip_gen: v7x
topology: tpu7x:2x2x1
jax: 0.10.0
libtpu: 0.0.40
codegen_flags: <defaults>
</compile_context>

<pallas_src>
import jax
import jax.numpy as jnp
from jax import lax
from jax.experimental import pallas as pl
from jax.experimental.pallas import tpu as pltpu


# ---------------------------------------------------------------------------
# Path 1: whole-table-in-VMEM fast path (small vocab) — one-hot MXU gather.
# ---------------------------------------------------------------------------
def _vmem_onehot_kernel(tok_ref, table_ref, pos_ref, out_ref):
    # tok_ref  : VMEM (B*T, 1) int32 -- clamped token ids
    # table_ref: VMEM (V, D)         -- whole embedding table
    # pos_ref  : VMEM (T, D)         -- position table
    # out_ref  : VMEM (B, T, D)
    B, T, D = out_ref.shape
    V = table_ref.shape[0]
    ids = tok_ref[...]                                                # (B*T, 1)
    onehot = ids == lax.broadcasted_iota(jnp.int32, (B * T, V), 1)    # (B*T, V)
    rows = jnp.dot(onehot.astype(table_ref.dtype), table_ref[...],
                   preferred_element_type=jnp.float32)                # (B*T, D)
    out_ref[...] = (rows.reshape(B, T, D)
                    + pos_ref[...][None, :, :]).astype(out_ref.dtype)


def _clip_embedding_vmem(tok_flat, table, pos):
    (BT,) = tok_flat.shape
    V, D = table.shape
    T, _ = pos.shape
    B = BT // T
    itemsize = jnp.dtype(table.dtype).itemsize
    usage = (V * D * itemsize            # table
             + BT * V * 4                # one-hot intermediate
             + 4 * BT * D * 4            # rows + (double-buffered) out block
             + 2 * T * D * itemsize      # positions
             + (1 << 20))
    vmem_limit = int(min(48 << 20, max(16 << 20, 2 * usage)))

    return pl.pallas_call(
        _vmem_onehot_kernel,
        out_shape=jax.ShapeDtypeStruct((B, T, D), table.dtype),
        grid=(1,),
        in_specs=[
            pl.BlockSpec((BT, 1), lambda i: (0, 0)),   # token ids
            pl.BlockSpec((V, D), lambda i: (0, 0)),    # whole table in VMEM
            pl.BlockSpec((T, D), lambda i: (0, 0)),    # position table
        ],
        out_specs=pl.BlockSpec((B, T, D), lambda i: (0, 0, 0)),
        compiler_params=pltpu.CompilerParams(
            dimension_semantics=("arbitrary",),
            vmem_limit_bytes=vmem_limit,
        ),
    )(tok_flat.reshape(BT, 1), table, pos)


# ---------------------------------------------------------------------------
# Path 2: HBM row-gather path (large vocab) — manual DMA, double-buffered.
# ---------------------------------------------------------------------------
def _hbm_gather_kernel(tok_ref, table_ref, pos_ref, out_ref, gbuf, sems):
    # tok_ref  : SMEM (B*T,) int32    -- scalar-prefetched, clamped flat ids
    # table_ref: HBM  (V, D)          -- memory_space=pl.ANY, manual DMA only
    # pos_ref  : VMEM (T, D)
    # out_ref  : VMEM (KB, T, D)      -- this grid step's output block
    # gbuf     : VMEM (2, KB, T, D)   -- double-buffered gather slab
    # sems     : DMA sems, shape (2,) -- ONE shared semaphore per slab slot
    i0 = pl.program_id(0)             # "parallel" axis (v7x TensorCores)
    i1 = pl.program_id(1)             # "arbitrary" axis (sequential, pipelined)
    n_steps = pl.num_programs(1)
    KB, T, D = out_ref.shape
    rows = KB * T

    def issue_block(block_idx, slot):
        """Start one (1, D) row DMA per token of `block_idx`; every copy
        signals the same per-slot semaphore."""
        base = block_idx * rows

        def body(r, carry):
            kb, t = carry
            tok = tok_ref[base + r]
            pltpu.make_async_copy(
                table_ref.at[pl.ds(tok, 1), :],        # (1, D) row in HBM
                gbuf.at[slot, kb, pl.ds(t, 1), :],     # its place in the slab
                sems.at[slot],
            ).start()
            t = t + 1
            wrap = t == T
            return jnp.where(wrap, kb + 1, kb), jnp.where(wrap, 0, t)

        lax.fori_loop(0, rows, body, (jnp.int32(0), jnp.int32(0)),
                      unroll=True if rows <= 32 else 8)

    slot = i1 % 2

    # Prologue: the first step of this core's sequence fetches its own block.
    @pl.when(i1 == 0)
    def _():
        issue_block(i0 * n_steps, 0)

    # Prefetch the next step's block into the other slot: overlaps the next
    # block's HBM latency with this step's wait + add + output write-back.
    @pl.when(i1 + 1 < n_steps)
    def _():
        issue_block(i0 * n_steps + i1 + 1, 1 - slot)

    # Single wait: all row copies of this slot signalled the same semaphore,
    # so one descriptor covering the whole (KB, T, D) slab (byte count equals
    # the sum of the issued (1, D) copies) waits for all of them at once.
    pltpu.make_async_copy(gbuf.at[slot], gbuf.at[slot], sems.at[slot]).wait()

    # One vectorised, lane-dense position add + full-tile store.
    out_ref[...] = (gbuf[slot] + pos_ref[...][None, :, :]).astype(out_ref.dtype)


def _plan_gather(B, T, D, itemsize, max_rows_per_step, core_split):
    """Pick KB (whole batch rows per step) and the (parallel, sequential) grid
    split.  The gather slab is double buffered, so per-step VMEM usage is
    ~4*KB*T*D*itemsize (2 gather slots + double-buffered output block): keep
    each slot <= 4 MiB so the total fits v7x's 64 MiB/TC with large margin."""
    max_bytes = 4 << 20                       # per gather slot
    kb = 1
    for c in range(1, B + 1):
        if B % c:
            continue
        r = c * T
        if r > max_rows_per_step or r * D * itemsize > max_bytes:
            continue
        kb = c
    n_blocks = B // kb
    if core_split is None:
        # Use both v7x TensorCores when the block count splits evenly; a
        # parallel outer axis is harmless on single-core v5e/v6e.
        core_split = 2 if (n_blocks >= 2 and n_blocks % 2 == 0) else 1
    if n_blocks % core_split:
        core_split = 1
    n_steps = n_blocks // core_split
    return kb, core_split, n_steps


def _clip_embedding_hbm(tok_flat, table, pos, max_rows_per_step, core_split):
    (BT,) = tok_flat.shape
    V, D = table.shape
    T, _ = pos.shape
    B = BT // T
    itemsize = jnp.dtype(table.dtype).itemsize
    kb, n_par, n_steps = _plan_gather(B, T, D, itemsize,
                                      max_rows_per_step, core_split)

    blk_bytes = kb * T * D * itemsize
    footprint = 4 * blk_bytes + 2 * T * D * itemsize + (1 << 20)
    vmem_limit = int(min(48 << 20, max(16 << 20, 2 * footprint)))

    return pl.pallas_call(
        _hbm_gather_kernel,
        out_shape=jax.ShapeDtypeStruct((B, T, D), table.dtype),
        grid_spec=pltpu.PrefetchScalarGridSpec(
            num_scalar_prefetch=1,                       # token ids -> SMEM
            grid=(n_par, n_steps),
            in_specs=[
                pl.BlockSpec(memory_space=pl.ANY),       # table stays in HBM
                pl.BlockSpec((T, D), lambda i0, i1, tok: (0, 0)),   # positions
            ],
            out_specs=pl.BlockSpec(
                (kb, T, D), lambda i0, i1, tok: (i0 * n_steps + i1, 0, 0)),
            scratch_shapes=[
                pltpu.VMEM((2, kb, T, D), table.dtype),  # gather slab, 2 slots
                pltpu.SemaphoreType.DMA((2,)),           # one shared sem/slot
            ],
        ),
        compiler_params=pltpu.CompilerParams(
            dimension_semantics=("parallel", "arbitrary"),
            vmem_limit_bytes=vmem_limit,
        ),
    )(tok_flat, table, pos)


# ---------------------------------------------------------------------------
# Public wrapper.
# ---------------------------------------------------------------------------
def clip_embedding(tokens, table, pos, *, force_path=None,
                   max_rows_per_step=256, core_split=None):
    """tokens: (B, T) int, table: (V, D), pos: (T, D)  ->  (B, T, D)."""
    B, T = tokens.shape
    V, D = table.shape
    assert pos.shape == (T, D)

    # Clamp ids: Pallas does not bounds-check gathered HBM rows.
    # (Semantic difference vs torch.nn.Embedding, which errors on OOB ids.)
    tok_flat = jnp.clip(tokens.reshape(B * T), 0, V - 1).astype(jnp.int32)

    itemsize = jnp.dtype(table.dtype).itemsize
    small = (V * D * itemsize <= (4 << 20)        # whole table fits easily
             and B * T * V * 4 <= (4 << 20)       # one-hot intermediate
             and B * T * D * itemsize <= (4 << 20)
             and B * T <= 512)
    use_vmem = force_path == "vmem" or (force_path is None and small)

    if use_vmem:
        return _clip_embedding_vmem(tok_flat, table, pos)
    return _clip_embedding_hbm(tok_flat, table, pos, max_rows_per_step,
                               core_split)


if __name__ == "__main__":
    B, T, V, D = 2, 8, 64, 128          # batch, n_token, n_vocab, n_embd

    key = jax.random.PRNGKey(0)
    k_tok, k_emb, k_pos = jax.random.split(key, 3)

    tokens = jax.random.randint(k_tok, (B, T), 0, V, dtype=jnp.int32)
    table = jax.random.normal(k_emb, (V, D), dtype=jnp.float32)   # Embedding weight
    # The module initialises position_embedding with zeros; use small random
    # values so the "+=" path is actually exercised.
    pos = 0.02 * jax.random.normal(k_pos, (T, D), dtype=jnp.float32)

    ref = table[tokens] + pos[None, :, :]

    # 1) Default: small table -> whole-table-in-VMEM one-hot fast path.
    out_fast = jax.block_until_ready(clip_embedding(tokens, table, pos))
    assert out_fast.shape == (B, T, D) and out_fast.dtype == table.dtype
    assert jnp.allclose(out_fast, ref, atol=1e-6, rtol=1e-6)

    # 2) HBM row-gather path, forced, with tiny rows-per-step so the
    #    cross-step double buffering (core_split=1 -> 2 sequential steps,
    #    prefetch exercised) is covered.
    out_db = jax.block_until_ready(
        clip_embedding(tokens, table, pos, force_path="hbm",
                       max_rows_per_step=8, core_split=1))
    assert jnp.allclose(out_db, ref, atol=1e-6, rtol=1e-6)

    # 3) HBM path with the 2-way "parallel" outer split (v7x TensorCores).
    out_par = jax.block_until_ready(
        clip_embedding(tokens, table, pos, force_path="hbm",
                       max_rows_per_step=8, core_split=2))
    assert jnp.allclose(out_par, ref, atol=1e-6, rtol=1e-6)

    print("KERNEL_OK")
</pallas_src>

<mosaic_0001>
module attributes {stable_mosaic.version = 11 : i64} {
  func.func @_vmem_onehot_kernel(%arg0: i32, %arg1: memref<16x1xi32, #tpu.memory_space<vmem>>, %arg2: memref<64x128xf32, #tpu.memory_space<vmem>>, %arg3: memref<8x128xf32, #tpu.memory_space<vmem>>, %arg4: memref<2x8x128xf32, #tpu.memory_space<vmem>>) attributes {dimension_semantics = [#tpu.dimension_semantics<arbitrary>], iteration_bounds = array<i64: 1>, scalar_prefetch = 0 : i64, scratch_operands = 0 : i64, tpu.core_type = #tpu.core_type<tc>, window_params = [{pipeline_mode = #tpu.pipeline_mode<synchronous>, transform_indices = @transform_0, window_bounds = array<i64: 16, 1>}, {pipeline_mode = #tpu.pipeline_mode<synchronous>, transform_indices = @transform_1, window_bounds = array<i64: 64, 128>}, {pipeline_mode = #tpu.pipeline_mode<synchronous>, transform_indices = @transform_2, window_bounds = array<i64: 8, 128>}, {pipeline_mode = #tpu.pipeline_mode<synchronous>, transform_indices = @transform_3, window_bounds = array<i64: 2, 8, 128>}]} {
    %c0 = arith.constant 0 : index
    %c0_0 = arith.constant 0 : index
    %0 = vector.load %arg1[%c0, %c0_0] : memref<16x1xi32, #tpu.memory_space<vmem>>, vector<16x1xi32>
    %1 = tpu.iota {dimensions = array<i32: 1>} : vector<16x64xi32>
    %2 = vector.broadcast %0 : vector<16x1xi32> to vector<16x64xi32>
    %3 = arith.cmpi eq, %2, %1 : vector<16x64xi32>
    %4 = arith.extui %3 : vector<16x64xi1> to vector<16x64xi32>
    %5 = arith.sitofp %4 : vector<16x64xi32> to vector<16x64xf32>
    %c0_1 = arith.constant 0 : index
    %c0_2 = arith.constant 0 : index
    %6 = vector.load %arg2[%c0_1, %c0_2] : memref<64x128xf32, #tpu.memory_space<vmem>>, vector<64x128xf32>
    %cst = arith.constant dense<0.000000e+00> : vector<16x128xf32>
    %7 = tpu.matmul %5, %6, %cst {dimension_numbers = #tpu.dot_dimension_numbers<[1], [0], [0], [1], [0, 0, 1, 1], [], []>} : vector<16x64xf32>, vector<64x128xf32>, vector<16x128xf32> -> vector<16x128xf32>
    %8 = vector.shape_cast %7 : vector<16x128xf32> to vector<2x8x128xf32>
    %c0_3 = arith.constant 0 : index
    %c0_4 = arith.constant 0 : index
    %9 = vector.load %arg3[%c0_3, %c0_4] : memref<8x128xf32, #tpu.memory_space<vmem>>, vector<8x128xf32>
    %10 = vector.shape_cast %9 : vector<8x128xf32> to vector<1x8x128xf32>
    %11 = vector.broadcast %10 : vector<1x8x128xf32> to vector<2x8x128xf32>
    %12 = arith.addf %8, %11 : vector<2x8x128xf32>
    %c0_5 = arith.constant 0 : index
    %c0_6 = arith.constant 0 : index
    %c0_7 = arith.constant 0 : index
    %13 = vector.load %arg4[%c0_5, %c0_6, %c0_7] : memref<2x8x128xf32, #tpu.memory_space<vmem>>, vector<2x8x128xf32>
    tpu.vector_store %arg4[%c0_5, %c0_6, %c0_7], %12 {strides = array<i32>} : memref<2x8x128xf32, #tpu.memory_space<vmem>>, vector<2x8x128xf32>,
    return
  }
  func.func @transform_0(%arg0: i32) -> (i32, i32) {
    %c0_i32 = arith.constant 0 : i32
    %c0_i32_0 = arith.constant 0 : i32
    %c0_i32_1 = arith.constant 0 : i32
    return %c0_i32, %c0_i32_0 : i32, i32
  }
  func.func @transform_1(%arg0: i32) -> (i32, i32) {
    %c0_i32 = arith.constant 0 : i32
    %c0_i32_0 = arith.constant 0 : i32
    %c0_i32_1 = arith.constant 0 : i32
    return %c0_i32, %c0_i32_0 : i32, i32
  }
  func.func @transform_2(%arg0: i32) -> (i32, i32) {
    %c0_i32 = arith.constant 0 : i32
    %c0_i32_0 = arith.constant 0 : i32
    %c0_i32_1 = arith.constant 0 : i32
    return %c0_i32, %c0_i32_0 : i32, i32
  }
  func.func @transform_3(%arg0: i32) -> (i32, i32, i32) {
    %c0_i32 = arith.constant 0 : i32
    %c0_i32_0 = arith.constant 0 : i32
    %c0_i32_1 = arith.constant 0 : i32
    %c0_i32_2 = arith.constant 0 : i32
    return %c0_i32, %c0_i32_0, %c0_i32_1 : i32, i32, i32
  }
}

</mosaic_0001>

<llo_original>
// kernel: tpu_custom_call.1
$region0: #{tpu_custom_call.1}
  #allocation0 [shape = 'u32[]', space=smem, size = 0x4, offset = 0x4, fixed_abs, tag = 'smem constant byte address 0x4 - core index']
  #allocation1 [shape = 'u32[144,128]{1,0:T(1,128)}', space=vmem, size = 0x12000, scoped, tag = 'internal scratch']
  %s0 = inlined_call_operand.vmem [shape: s32[16,1], index: 0, kind: input, shape index: {}]
  %s1 = inlined_call_operand.hbm [shape: f32[64,128], index: 1, kind: input, shape index: {}]
  %s2 = inlined_call_operand.vmem [shape: f32[8,128], index: 2, kind: input, shape index: {}]
  %s3 = inlined_call_operand.hbm [shape: f32[2,8,128], index: 3, kind: output, shape index: {}]
  %s4 = sld [smem:[#allocation0]]
  $region26: #{tpu_custom_call.1} parent=0
    _
  %s6 = ssub.s32 1, %s4
  %s7 = scalar_select 0, %s6, %s4
  $region1: #{tpu_custom_call.1} parent=0
    #allocation2 [shape = 'u8[32768]{0}', space=vmem, size = 0x8000, scoped, tag = 'input window, operand 1, single buffered']
    #allocation3 [shape = 's32[1]{0}', space=sflag, size = 0x4, scoped, tag = 'scoped memory for tpu_custom_call.1']
    #allocation4 [shape = 's32[1]{0}', space=sflag, size = 0x4, scoped, tag = 'scoped memory for tpu_custom_call.1']
    #allocation5 [shape = 'u8[8192]{0}', space=vmem, size = 0x2000, scoped, tag = 'output window, operand 0, single buffered']
    %8 = vsyncpa [#allocation3], 0
    %9 = vsyncpa [#allocation4], 0
    // Predicated region
    $region2: #{tpu_custom_call.1} parent=1 // pred_check
      _
    $region3: #{tpu_custom_call.1} parent=1 // pred_check_branch
      %11 = sbr.rel (0) target = $region5
    $region4: #{tpu_custom_call.1} parent=1 // pred_region
      _
    $region5: #{tpu_custom_call.1} parent=1 // pred_fallthru
      _
    // Predicated region
    $region6: #{tpu_custom_call.1} parent=1 // pred_check
      _
    $region7: #{tpu_custom_call.1} parent=1 // pred_check_branch
      %13 = sbr.rel (0) target = $region9
    $region8: #{tpu_custom_call.1} parent=1 // pred_region
      %s15 = ssub.s32 1024, 1024
      %16 = vsyncadd [#allocation3], %s15
      %s17 = sshll.u32 [#allocation2], 4
      %s18 = int_to_ptr.vmem [resolvable:$true] %s17
      %23 = dma.hbm_to_vmem [thread:$0]  %s1, 1024, %s18, [#allocation3], 128, 128, 8
    $region9: #{tpu_custom_call.1} parent=1 // pred_fallthru
      _
    // Predicated region
    $region10: #{tpu_custom_call.1} parent=1 // pred_check
      _
    $region11: #{tpu_custom_call.1} parent=1 // pred_check_branch
      %25 = sbr.rel (0) target = $region13
    $region12: #{tpu_custom_call.1} parent=1 // pred_region
      _
    $region13: #{tpu_custom_call.1} parent=1 // pred_fallthru
      _
    // Predicated region
    $region14: #{tpu_custom_call.1} parent=1 // pred_check
      _
    $region15: #{tpu_custom_call.1} parent=1 // pred_check_branch
      %27 = sbr.rel (0) target = $region17
    $region16: #{tpu_custom_call.1} parent=1 // pred_region
      %28 = dma.done [#allocation3], 1024
    $region17: #{tpu_custom_call.1} parent=1 // pred_fallthru
      _
    %v29 = vld [vmem:[%s0] sm:$0xff]
    %v30 = vld [vmem:[%s0 + $0x8] sm:$0xff]
    %v31 = vlaneseq
    %v32 = vand.u32 %v31, 127
    %33 = vset.pattern.permute.xlu0 0
    %34 = vperm.xlu0 %33, %v29
    %v35 = vpop.permute.xlu0 %34
    %36 = vset.pattern.permute.xlu0 0
    %37 = vperm.xlu0 %36, %v30
    %v38 = vpop.permute.xlu0 %37
    %vm39 = vcmp.eq.s32.totalorder %v35, %v32
    %vm40 = vcmp.eq.s32.totalorder %v38, %v32
    %v41 = vsel %vm39, 1, 0
    %v42 = vsel %vm40, 1, 0
    %v43 = vcvt.s32.f32 %v41
    %v44 = vcvt.s32.f32 %v42
    %v45 = vld [vmem:[#allocation2] sm:$0xff]
    %v46 = vld [vmem:[#allocation2 + $0x8] sm:$0xff]
    %v47 = vld [vmem:[#allocation2 + $0x10] sm:$0xff]
    %v48 = vld [vmem:[#allocation2 + $0x18] sm:$0xff]
    %v49 = vld [vmem:[#allocation2 + $0x20] sm:$0xff]
    %v50 = vld [vmem:[#allocation2 + $0x28] sm:$0xff]
    %v51 = vld [vmem:[#allocation2 + $0x30] sm:$0xff]
    %v52 = vld [vmem:[#allocation2 + $0x38] sm:$0xff]
    %vm53 = vcmask 523264
    %v55 = vsel %vm53, %v43, 0
    %v58 = vsel %vm53, %v44, 0
    %60 = vmatprep.subr.mxu0 0.0
    %61 = vmatpush1.msra.mxu0 %v45
    %62 = vmatprep.subr.mxu0 0.0
    %63 = vmatpush1.msra.mxu0 %v46
    %64 = vmatprep.subr.mxu0 0.0
    %65 = vmatpush1.msra.mxu0 %v47
    %66 = vmatprep.subr.mxu0 0.0
    %67 = vmatpush1.msra.mxu0 %v48
    %68 = vmatprep.subr.mxu0 0.0
    %69 = vmatpush1.msra.mxu0 %v49
    %70 = vmatprep.subr.mxu0 0.0
    %71 = vmatpush1.msra.mxu0 %v50
    %72 = vmatprep.subr.mxu0 0.0
    %73 = vmatpush1.msra.mxu0 %v51
    %74 = vmatprep.subr.mxu0 0.0
    %75 = vmatpush1.msra.mxu0 %v52
    %76 = vmatprep.subr.mxu0 0.0
    %77 = vmatpush1.msra.mxu0 0.0
    %78 = vmatprep.subr.mxu0 0.0
    %79 = vmatpush1.msra.mxu0 0.0
    %80 = vmatprep.subr.mxu0 0.0
    %81 = vmatpush1.msra.mxu0 0.0
    %82 = vmatprep.subr.mxu0 0.0
    %83 = vmatpush1.msra.mxu0 0.0
    %84 = vmatprep.subr.mxu0 0.0
    %85 = vmatpush1.msra.mxu0 0.0
    %86 = vmatprep.subr.mxu0 0.0
    %87 = vmatpush1.msra.mxu0 0.0
    %88 = vmatprep.subr.mxu0 0.0
    %89 = vmatpush1.msra.mxu0 0.0
    %90 = vmatprep.subr.mxu0 0.0
    %91 = vmatpush1.msra.mxu0 0.0
    %92 = vmatprep.subr.mxu0 0.0
    %93 = vmatpush1.msra.mxu0 0.0
    %94 = vmatprep.subr.mxu0 0.0
    %95 = vmatpush1.msra.mxu0 0.0
    %96 = vmatprep.subr.mxu0 0.0
    %97 = vmatpush1.msra.mxu0 0.0
    %98 = vmatprep.subr.mxu0 0.0
    %99 = vmatpush1.msra.mxu0 0.0
    %100 = vmatprep.subr.mxu0 0.0
    %101 = vmatpush1.msra.mxu0 0.0
    %102 = vmatprep.subr.mxu0 0.0
    %103 = vmatpush1.msra.mxu0 0.0
    %104 = vmatprep.subr.mxu0 0.0
    %105 = vmatpush1.msra.mxu0 0.0
    %106 = vmatprep.subr.mxu0 0.0
    %107 = vmatpush1.msra.mxu0 0.0
    %108 = vmatprep.subr.mxu0 0.0
    %109 = vmatpush1.msra.mxu0 0.0
    %110 = vmatprep.subr.mxu0 0.0
    %111 = vmatpush1.msra.mxu0 0.0
    %112 = vmatprep.subr.mxu0 0.0
    %113 = vmatpush1.msra.mxu0 0.0
    %114 = vmatprep.subr.mxu0 0.0
    %115 = vmatpush1.msra.mxu0 0.0
    %116 = vmatprep.subr.mxu0 0.0
    %117 = vmatpush1.msra.mxu0 0.0
    %118 = vmatprep.subr.mxu0 0.0
    %119 = vmatpush1.msra.mxu0 0.0
    %120 = vmatprep.subr.mxu0 0.0
    %121 = vmatpush1.msra.mxu0 0.0
    %122 = vmatprep.subr.mxu0 0.0
    %123 = vmatpush1.msra.mxu0 0.0
    %124 = vmatprep.mubr.f32.mxu0 0.0
    %125 = vmatmul.mubr.f32.gmra.mrb[0].mxu0 %v55
    %v126 = vpop.f32.mrb[0].mxu0
    %v127 = vadd.f32 0.0, %v126
    %v128 = vpop.f32.mrb[0].mxu0
    %129 = vmatprep.mubr.f32.mxu0 0.0
    %130 = vmatmul.mubr.f32.gmra.mrb[0].mxu0 %v58
    %v131 = vpop.f32.mrb[0].mxu0
    %v132 = vadd.f32 0.0, %v131
    %v133 = vpop.f32.mrb[0].mxu0
    %134 = vdwg.mxu0
    %v135 = vld [vmem:[%s2] sm:$0xff]
    %v136 = vadd.f32 %v127, %v135
    %v137 = vadd.f32 %v132, %v135
    %138 = vst [vmem:[#allocation5] sm:$0xff] %v136
    %139 = vst [vmem:[#allocation5 + $0x8] sm:$0xff] %v137
    // Predicated region
    $region18: #{tpu_custom_call.1} parent=1 // pred_check
      _
    $region19: #{tpu_custom_call.1} parent=1 // pred_check_branch
      %141 = sbr.rel (0) target = $region21
    $region20: #{tpu_custom_call.1} parent=1 // pred_region
      %s143 = ssub.s32 256, 256
      %144 = vsyncadd [#allocation4], %s143
      %s145 = sshll.u32 [#allocation5], 4
      %s146 = int_to_ptr.vmem [resolvable:$true] %s145
      %151 = dma.vmem_to_hbm [thread:$0]  %s146, 256, %s3, [#allocation4], 128, 128, 8
    $region21: #{tpu_custom_call.1} parent=1 // pred_fallthru
      _
    // Predicated region
    $region22: #{tpu_custom_call.1} parent=1 // pred_check
      _
    $region23: #{tpu_custom_call.1} parent=1 // pred_check_branch
      %153 = sbr.rel (0) target = $region25
    $region24: #{tpu_custom_call.1} parent=1 // pred_region
      %154 = dma.done [#allocation4], 256
    $region25: #{tpu_custom_call.1} parent=1 // pred_fallthru
      _
    %155 = vsyncpa [#allocation3], 1
    %156 = vsyncpa [#allocation4], 1

</llo_original>
